<compile_context>
chip_gen: v6e
topology: v6e:2x2x1
jax: 0.10.0
libtpu: 0.0.40
codegen_flags: <defaults>
</compile_context>

<pallas_src>
import functools

import jax
import jax.numpy as jnp
from jax.experimental import pallas as pl
from jax.experimental.pallas import tpu as pltpu


_VMEM_LIMIT = 48 * 1024 * 1024    # scoped VMEM limit: safe on v7x (64 MiB/TC)
_VMEM_BUDGET = 36 * 1024 * 1024   # what we budget for tiles (headroom kept)


def _cdiv(a, b):
    return -(-a // b)


def _sigmoid_neg(m):
    """Numerically stable sigmoid(-m)."""
    e = jnp.exp(-jnp.abs(m))
    return jnp.where(m >= 0, e / (1.0 + e), 1.0 / (1.0 + e))


def _epilogue(logits, closed_ref, open_ref, use_softmax):
    """Softmax (optional) + open-set score, stored lane-exact."""
    m = jnp.max(logits, axis=-1, keepdims=True)                 # (TM, 1)
    if use_softmax:
        e = jnp.exp(logits - m)
        denom = jnp.sum(e, axis=-1, keepdims=True)
        inv = pl.reciprocal(denom, approx=False)                # keep rows normalized
        closed = e * inv
        # max(softmax(logits)) == 1/denom -> no second cross-lane reduce.
        open_val = _sigmoid_neg(inv)
    else:
        closed = logits
        open_val = _sigmoid_neg(m)
    closed_ref[...] = closed.astype(closed_ref.dtype)
    open_ref[...] = open_val.astype(open_ref.dtype)             # (TM, 1) store


def _kernel_resident(x_ref, w_ref, b_ref, closed_ref, open_ref, *, use_softmax):
    """Fast path: one reduction step, W held resident in VMEM."""
    logits = jnp.dot(x_ref[...].astype(jnp.bfloat16),
                     w_ref[...].astype(jnp.bfloat16),
                     preferred_element_type=jnp.float32) + b_ref[...]
    _epilogue(logits, closed_ref, open_ref, use_softmax)


def _kernel_ktiled(x_ref, w_ref, b_ref, closed_ref, open_ref, acc_ref, *,
                   use_softmax):
    """Fallback for large D: feature (reduction) axis tiled, f32 accumulator."""
    k = pl.program_id(1)

    @pl.when(k == 0)
    def _():
        acc_ref[...] = jnp.zeros_like(acc_ref)

    acc_ref[...] += jnp.dot(x_ref[...].astype(jnp.bfloat16),
                            w_ref[...].astype(jnp.bfloat16),
                            preferred_element_type=jnp.float32)

    @pl.when(k == pl.num_programs(1) - 1)
    def _():
        _epilogue(acc_ref[...] + b_ref[...], closed_ref, open_ref, use_softmax)


def _choose_batch_tiling(B, max_rows):
    """Pick (TM, Bp) with Bp % TM == 0, Bp >= B.

    Prefers no padding (TM divides B); splits into >= 2 tiles when free so the
    'parallel' batch axis can shard across both TensorCores on v7x; otherwise
    picks near-even multiple-of-8 tiles with minimal padding.
    """
    max_rows = max(8, min(int(max_rows), 1024))
    if B <= max_rows:
        if B >= 16 and B % 16 == 0:
            return B // 2, B            # two tiles -> both TCs busy on v7x
        return B, B                     # single full-dim tile (any B is legal)
    base = (max_rows // 8) * 8
    t = base
    while t >= 8:
        if B % t == 0:
            return t, B                 # exact tiling, no padding, no slicing
        t -= 8
    # Ragged batch: minimal padding with near-even multiple-of-8 tiles.
    n_tiles = _cdiv(B, base)
    t = _cdiv(_cdiv(B, n_tiles), 8) * 8
    return t, _cdiv(B, t) * t


def ensemble_forward(imgs, w, b, *, use_softmax=False):
    """imgs: (B, C, H, W) f32; w: (D, K); b: (K,).
    Returns (closed_preds[B, K], open_preds[B])."""
    B = imgs.shape[0]
    x = imgs.reshape(B, -1)                      # free reshape, no extra HBM pass
    D = x.shape[1]
    K = w.shape[1]
    w = w.astype(jnp.float32)
    b2 = b.reshape(1, K).astype(jnp.float32)

    w_resident_bytes = 2 * D * K * 4             # double-buffered f32 W block

    use_resident = w_resident_bytes <= _VMEM_BUDGET // 2
    if use_resident:
        # x + closed + open bytes per batch row (double-buffered, f32)
        row_bytes = 2 * (D + K + 1) * 4
        max_rows = (_VMEM_BUDGET - w_resident_bytes) // row_bytes
        if max_rows < min(B, 8):
            use_resident = False

    if use_resident:
        # ---------------- fast path: W resident, single reduction step -------
        TM, Bp = _choose_batch_tiling(B, max_rows)
        x_in = x if Bp == B else jnp.zeros((Bp, D), x.dtype).at[:B].set(x)

        kernel = functools.partial(_kernel_resident, use_softmax=use_softmax)
        closed_p, open_p = pl.pallas_call(
            kernel,
            out_shape=(
                jax.ShapeDtypeStruct((Bp, K), jnp.float32),
                jax.ShapeDtypeStruct((Bp, 1), jnp.float32),
            ),
            grid=(Bp // TM,),
            in_specs=[
                pl.BlockSpec((TM, D), lambda i: (i, 0)),     # x tile (f32 stream)
                pl.BlockSpec((D, K), lambda i: (0, 0)),      # W: fetched once
                pl.BlockSpec((1, K), lambda i: (0, 0)),      # bias
            ],
            out_specs=[
                pl.BlockSpec((TM, K), lambda i: (i, 0)),     # closed preds
                pl.BlockSpec((TM, 1), lambda i: (i, 0)),     # open preds (column)
            ],
            compiler_params=pltpu.CompilerParams(
                dimension_semantics=("parallel",),
                vmem_limit_bytes=_VMEM_LIMIT,
            ),
            cost_estimate=pl.CostEstimate(
                flops=2 * Bp * D * K,
                transcendentals=(Bp * (K + 2)) if use_softmax else (2 * Bp),
                bytes_accessed=4 * (Bp * D + D * K + K + Bp * K + Bp),
            ),
        )(x_in, w, b2)
    else:
        # ------------- fallback: tile the feature (reduction) axis ----------
        # TODO(synk): very large K additionally needs a class-dim grid axis and
        # a two-pass softmax epilogue; not implemented here.
        TM, Bp = _choose_batch_tiling(B, 256)
        fixed = (TM * K + 2 * TM * K + 2 * TM + 2 * K) * 4
        TD = max(128, ((_VMEM_BUDGET - fixed) // (8 * (TM + K))) // 128 * 128)
        TD = min(TD, 2048)
        Dp = _cdiv(D, TD) * TD
        if Bp != B or Dp != D:
            x_in = jnp.zeros((Bp, Dp), x.dtype).at[:B, :D].set(x)
        else:
            x_in = x
        w_in = jnp.zeros((Dp, K), w.dtype).at[:D].set(w) if Dp != D else w

        kernel = functools.partial(_kernel_ktiled, use_softmax=use_softmax)
        closed_p, open_p = pl.pallas_call(
            kernel,
            out_shape=(
                jax.ShapeDtypeStruct((Bp, K), jnp.float32),
                jax.ShapeDtypeStruct((Bp, 1), jnp.float32),
            ),
            grid=(Bp // TM, Dp // TD),
            in_specs=[
                pl.BlockSpec((TM, TD), lambda i, k: (i, k)),
                pl.BlockSpec((TD, K), lambda i, k: (k, 0)),
                pl.BlockSpec((1, K), lambda i, k: (0, 0)),
            ],
            out_specs=[
                pl.BlockSpec((TM, K), lambda i, k: (i, 0)),
                pl.BlockSpec((TM, 1), lambda i, k: (i, 0)),
            ],
            scratch_shapes=[pltpu.VMEM((TM, K), jnp.float32)],
            compiler_params=pltpu.CompilerParams(
                dimension_semantics=("parallel", "arbitrary"),
                vmem_limit_bytes=_VMEM_LIMIT,
            ),
        )(x_in, w_in, b2)

    closed = closed_p if Bp == B else closed_p[:B]
    open_ = (open_p if Bp == B else open_p[:B]).reshape(B)
    return closed, open_


def _reference(imgs, w, b, *, use_softmax=False):
    B = imgs.shape[0]
    x = imgs.reshape(B, -1)
    logits = x @ w + b
    closed = jax.nn.softmax(logits, axis=-1) if use_softmax else logits
    open_ = jax.nn.sigmoid(-jnp.max(closed, axis=-1))
    return closed, open_


if __name__ == "__main__":
    key = jax.random.PRNGKey(0)
    k_img, k_w, k_b = jax.random.split(key, 3)

    B, C, H, W = 2, 4, 16, 16
    D = C * H * W          # 1024
    K = 32                 # number of closed-set classes

    imgs = jax.random.normal(k_img, (B, C, H, W), dtype=jnp.float32)
    # Deterministic "linear classifier" weights for the inner model.
    w = jax.random.normal(k_w, (D, K), dtype=jnp.float32) * 0.02
    b = jax.random.normal(k_b, (K,), dtype=jnp.float32) * 0.01

    ok = True
    for use_softmax in (False, True):
        closed, open_ = ensemble_forward(imgs, w, b, use_softmax=use_softmax)
        jax.block_until_ready((closed, open_))
        closed_ref, open_ref = _reference(imgs, w, b, use_softmax=use_softmax)
        # bf16 MXU stream -> loose-but-tight-enough tolerance.
        if not (jnp.allclose(closed, closed_ref, atol=2e-2, rtol=2e-2)
                and jnp.allclose(open_, open_ref, atol=2e-2, rtol=2e-2)):
            ok = False

    if ok:
        print("KERNEL_OK")
</pallas_src>

<mosaic_0001>
module attributes {stable_mosaic.version = 11 : i64} {
  func.func @_kernel_resident(%arg0: i32, %arg1: memref<2x1024xf32, #tpu.memory_space<vmem>>, %arg2: memref<1024x32xf32, #tpu.memory_space<vmem>>, %arg3: memref<1x32xf32, #tpu.memory_space<vmem>>, %arg4: memref<2x32xf32, #tpu.memory_space<vmem>>, %arg5: memref<2x1xf32, #tpu.memory_space<vmem>>) attributes {dimension_semantics = [#tpu.dimension_semantics<parallel>], iteration_bounds = array<i64: 1>, scalar_prefetch = 0 : i64, scratch_operands = 0 : i64, tpu.core_type = #tpu.core_type<tc>, window_params = [{transform_indices = @transform_0, window_bounds = array<i64: 2, 1024>}, {pipeline_mode = #tpu.pipeline_mode<synchronous>, transform_indices = @transform_1, window_bounds = array<i64: 1024, 32>}, {pipeline_mode = #tpu.pipeline_mode<synchronous>, transform_indices = @transform_2, window_bounds = array<i64: 1, 32>}, {transform_indices = @transform_3, window_bounds = array<i64: 2, 32>}, {transform_indices = @transform_4, window_bounds = array<i64: 2, 1>}]} {
    %c0 = arith.constant 0 : index
    %c0_0 = arith.constant 0 : index
    %0 = vector.load %arg1[%c0, %c0_0] : memref<2x1024xf32, #tpu.memory_space<vmem>>, vector<2x1024xf32>
    %1 = arith.truncf %0 : vector<2x1024xf32> to vector<2x1024xbf16>
    %c0_1 = arith.constant 0 : index
    %c0_2 = arith.constant 0 : index
    %2 = vector.load %arg2[%c0_1, %c0_2] : memref<1024x32xf32, #tpu.memory_space<vmem>>, vector<1024x32xf32>
    %3 = arith.truncf %2 : vector<1024x32xf32> to vector<1024x32xbf16>
    %cst = arith.constant dense<0.000000e+00> : vector<2x32xf32>
    %4 = tpu.matmul %1, %3, %cst {dimension_numbers = #tpu.dot_dimension_numbers<[1], [0], [0], [1], [0, 0, 1, 1], [], []>} : vector<2x1024xbf16>, vector<1024x32xbf16>, vector<2x32xf32> -> vector<2x32xf32>
    %c0_3 = arith.constant 0 : index
    %c0_4 = arith.constant 0 : index
    %5 = vector.load %arg3[%c0_3, %c0_4] : memref<1x32xf32, #tpu.memory_space<vmem>>, vector<1x32xf32>
    %6 = vector.broadcast %5 : vector<1x32xf32> to vector<2x32xf32>
    %7 = arith.addf %4, %6 : vector<2x32xf32>
    %cst_5 = arith.constant dense<0xFF800000> : vector<2xf32>
    %8 = vector.multi_reduction <maximumf>, %7, %cst_5 [1] : vector<2x32xf32> to vector<2xf32>
    %9 = vector.shape_cast %8 : vector<2xf32> to vector<2x1xf32>
    %10 = math.absf %9 : vector<2x1xf32>
    %cst_6 = arith.constant 0.000000e+00 : f32
    %11 = vector.broadcast %cst_6 : f32 to vector<2x1xf32>
    %12 = arith.subf %11, %10 : vector<2x1xf32>
    %13 = math.exp %12 : vector<2x1xf32>
    %cst_7 = arith.constant 0.000000e+00 : f32
    %14 = vector.broadcast %cst_7 : f32 to vector<2x1xf32>
    %15 = arith.cmpf oge, %9, %14 : vector<2x1xf32>
    %cst_8 = arith.constant 1.000000e+00 : f32
    %16 = vector.broadcast %cst_8 : f32 to vector<2x1xf32>
    %17 = arith.addf %16, %13 : vector<2x1xf32>
    %18 = arith.divf %13, %17 : vector<2x1xf32>
    %cst_9 = arith.constant 1.000000e+00 : f32
    %19 = vector.broadcast %cst_9 : f32 to vector<2x1xf32>
    %20 = arith.addf %19, %13 : vector<2x1xf32>
    %cst_10 = arith.constant 1.000000e+00 : f32
    %21 = vector.broadcast %cst_10 : f32 to vector<2x1xf32>
    %22 = arith.divf %21, %20 : vector<2x1xf32>
    %23 = arith.select %15, %18, %22 : vector<2x1xi1>, vector<2x1xf32>
    %c0_11 = arith.constant 0 : index
    %c0_12 = arith.constant 0 : index
    %24 = vector.load %arg4[%c0_11, %c0_12] : memref<2x32xf32, #tpu.memory_space<vmem>>, vector<2x32xf32>
    tpu.vector_store %arg4[%c0_11, %c0_12], %7 {strides = array<i32>} : memref<2x32xf32, #tpu.memory_space<vmem>>, vector<2x32xf32>,
    %c0_13 = arith.constant 0 : index
    %c0_14 = arith.constant 0 : index
    %25 = vector.load %arg5[%c0_13, %c0_14] : memref<2x1xf32, #tpu.memory_space<vmem>>, vector<2x1xf32>
    tpu.vector_store %arg5[%c0_13, %c0_14], %23 {strides = array<i32>} : memref<2x1xf32, #tpu.memory_space<vmem>>, vector<2x1xf32>,
    return
  }
  func.func @transform_0(%arg0: i32) -> (i32, i32) {
    %c0_i32 = arith.constant 0 : i32
    %c0_i32_0 = arith.constant 0 : i32
    return %arg0, %c0_i32 : i32, i32
  }
  func.func @transform_1(%arg0: i32) -> (i32, i32) {
    %c0_i32 = arith.constant 0 : i32
    %c0_i32_0 = arith.constant 0 : i32
    %c0_i32_1 = arith.constant 0 : i32
    return %c0_i32, %c0_i32_0 : i32, i32
  }
  func.func @transform_2(%arg0: i32) -> (i32, i32) {
    %c0_i32 = arith.constant 0 : i32
    %c0_i32_0 = arith.constant 0 : i32
    %c0_i32_1 = arith.constant 0 : i32
    return %c0_i32, %c0_i32_0 : i32, i32
  }
  func.func @transform_3(%arg0: i32) -> (i32, i32) {
    %c0_i32 = arith.constant 0 : i32
    %c0_i32_0 = arith.constant 0 : i32
    return %arg0, %c0_i32 : i32, i32
  }
  func.func @transform_4(%arg0: i32) -> (i32, i32) {
    %c0_i32 = arith.constant 0 : i32
    %c0_i32_0 = arith.constant 0 : i32
    return %arg0, %c0_i32 : i32, i32
  }
}

</mosaic_0001>

<llo_original>
// kernel: tpu_custom_call.1
$region0: #{tpu_custom_call.1}
  #allocation0 [shape = 'u32[]', space=smem, size = 0x4, offset = 0x4, fixed_abs, tag = 'smem constant byte address 0x4 - core index']
  #allocation1 [shape = 'u32[144,128]{1,0:T(1,128)}', space=vmem, size = 0x12000, scoped, tag = 'internal scratch']
  %s0 = inlined_call_operand.vmem [shape: f32[2,1024], index: 0, kind: input, shape index: {}]
  %s1 = inlined_call_operand.vmem [shape: f32[1024,32], index: 1, kind: input, shape index: {}]
  %s2 = inlined_call_operand.vmem [shape: f32[1,32], index: 2, kind: input, shape index: {}]
  %s3 = inlined_call_operand.hbm [shape: f32[2,32], index: 3, kind: output, shape index: {0}]
  %s4 = inlined_call_operand.vmem [shape: f32[2,1], index: 4, kind: output, shape index: {1}]
  %5 = xla_tuple %s3, %s4
  %s6 = sld [smem:[#allocation0]]
  $region30: #{tpu_custom_call.1} parent=0
    _
  %s8 = ssub.s32 1, %s6
  %s9 = scalar_select 0, %s8, %s6
  $region1: #{tpu_custom_call.1} parent=0
    #allocation2 [shape = 'u8[1024]{0}', space=vmem, size = 0x400, scoped, tag = 'output window, operand 0, single buffered']
    #allocation3 [shape = 's32[1]{0}', space=sflag, size = 0x4, scoped, tag = 'scoped memory for tpu_custom_call.1']
    %10 = vsyncpa [#allocation3], 0
    // Predicated region
    $region2: #{tpu_custom_call.1} parent=1 // pred_check
      _
    $region3: #{tpu_custom_call.1} parent=1 // pred_check_branch
      %12 = sbr.rel (0) target = $region5
    $region4: #{tpu_custom_call.1} parent=1 // pred_region
      _
    $region5: #{tpu_custom_call.1} parent=1 // pred_fallthru
      _
    // Predicated region
    $region6: #{tpu_custom_call.1} parent=1 // pred_check
      _
    $region7: #{tpu_custom_call.1} parent=1 // pred_check_branch
      %14 = sbr.rel (0) target = $region9
    $region8: #{tpu_custom_call.1} parent=1 // pred_region
      _
    $region9: #{tpu_custom_call.1} parent=1 // pred_fallthru
      _
    // Predicated region
    $region10: #{tpu_custom_call.1} parent=1 // pred_check
      _
    $region11: #{tpu_custom_call.1} parent=1 // pred_check_branch
      %16 = sbr.rel (0) target = $region13
    $region12: #{tpu_custom_call.1} parent=1 // pred_region
      _
    $region13: #{tpu_custom_call.1} parent=1 // pred_fallthru
      _
    %v18 = vld [vmem:[%s0] sm:$0xff]
    %v19 = vld [vmem:[%s0 + $0x8] sm:$0xff]
    %v22 = vcombine.high %v18, %v18
    %v24 = vunpack.c.l.s4 1983009808
    %v25 = vunpack.c.0.s8 %v24
    %v26 = vlaneseq
    %v27 = vshrl.u32 %v26, 7
    %v28 = vsub.s32 %v25, %v27
    %v29 = vrot.slane %v18, %v28
    %v31 = vunpack.c.l.s4 1983009808
    %v32 = vunpack.c.0.s8 %v31
    %v33 = vlaneseq
    %v34 = vshrl.u32 %v33, 7
    %v35 = vsub.s32 %v32, %v34
    %v36 = vrot.slane %v22, %v35
    %v37 = vcombine.high %v29, %v29
    %v38 = vcombine.high %v36, %v36
    %v39 = vcombine.high %v19, %v19
    %v41 = vunpack.c.l.s4 1983009808
    %v42 = vunpack.c.0.s8 %v41
    %v43 = vlaneseq
    %v44 = vshrl.u32 %v43, 7
    %v45 = vsub.s32 %v42, %v44
    %v46 = vrot.slane %v19, %v45
    %v48 = vunpack.c.l.s4 1983009808
    %v49 = vunpack.c.0.s8 %v48
    %v50 = vlaneseq
    %v51 = vshrl.u32 %v50, 7
    %v52 = vsub.s32 %v49, %v51
    %v53 = vrot.slane %v39, %v52
    %v54 = vcombine.high %v46, %v46
    %v55 = vcombine.high %v53, %v53
    %v64 = vpack.c.bf16 %v29, %v29
    %v65 = vpack.c.bf16 %v37, %v37
    %v66 = vpack.c.bf16 %v36, %v36
    %v67 = vpack.c.bf16 %v38, %v38
    %v68 = vpack.c.bf16 %v46, %v46
    %v69 = vpack.c.bf16 %v54, %v54
    %v70 = vpack.c.bf16 %v53, %v53
    %v71 = vpack.c.bf16 %v55, %v55
    %v72 = vld [vmem:[%s1] sm:$0xff]
    %v73 = vld [vmem:[%s1 + $0x8] sm:$0xff]
    %v74 = vld [vmem:[%s1 + $0x10] sm:$0xff]
    %v75 = vld [vmem:[%s1 + $0x18] sm:$0xff]
    %v76 = vld [vmem:[%s1 + $0x20] sm:$0xff]
    %v77 = vld [vmem:[%s1 + $0x28] sm:$0xff]
    %v78 = vld [vmem:[%s1 + $0x30] sm:$0xff]
    %v79 = vld [vmem:[%s1 + $0x38] sm:$0xff]
    %v80 = vld [vmem:[%s1 + $0x40] sm:$0xff]
    %v81 = vld [vmem:[%s1 + $0x48] sm:$0xff]
    %v82 = vld [vmem:[%s1 + $0x50] sm:$0xff]
    %v83 = vld [vmem:[%s1 + $0x58] sm:$0xff]
    %v84 = vld [vmem:[%s1 + $0x60] sm:$0xff]
    %v85 = vld [vmem:[%s1 + $0x68] sm:$0xff]
    %v86 = vld [vmem:[%s1 + $0x70] sm:$0xff]
    %v87 = vld [vmem:[%s1 + $0x78] sm:$0xff]
    %v88 = vld [vmem:[%s1 + $0x80] sm:$0xff]
    %v89 = vld [vmem:[%s1 + $0x88] sm:$0xff]
    %v90 = vld [vmem:[%s1 + $0x90] sm:$0xff]
    %v91 = vld [vmem:[%s1 + $0x98] sm:$0xff]
    %v92 = vld [vmem:[%s1 + $0xa0] sm:$0xff]
    %v93 = vld [vmem:[%s1 + $0xa8] sm:$0xff]
    %v94 = vld [vmem:[%s1 + $0xb0] sm:$0xff]
    %v95 = vld [vmem:[%s1 + $0xb8] sm:$0xff]
    %v96 = vld [vmem:[%s1 + $0xc0] sm:$0xff]
    %v97 = vld [vmem:[%s1 + $0xc8] sm:$0xff]
    %v98 = vld [vmem:[%s1 + $0xd0] sm:$0xff]
    %v99 = vld [vmem:[%s1 + $0xd8] sm:$0xff]
    %v100 = vld [vmem:[%s1 + $0xe0] sm:$0xff]
    %v101 = vld [vmem:[%s1 + $0xe8] sm:$0xff]
    %v102 = vld [vmem:[%s1 + $0xf0] sm:$0xff]
    %v103 = vld [vmem:[%s1 + $0xf8] sm:$0xff]
    %v104 = vld [vmem:[%s1 + $0x100] sm:$0xff]
    %v105 = vld [vmem:[%s1 + $0x108] sm:$0xff]
    %v106 = vld [vmem:[%s1 + $0x110] sm:$0xff]
    %v107 = vld [vmem:[%s1 + $0x118] sm:$0xff]
    %v108 = vld [vmem:[%s1 + $0x120] sm:$0xff]
    %v109 = vld [vmem:[%s1 + $0x128] sm:$0xff]
    %v110 = vld [vmem:[%s1 + $0x130] sm:$0xff]
    %v111 = vld [vmem:[%s1 + $0x138] sm:$0xff]
    %v112 = vld [vmem:[%s1 + $0x140] sm:$0xff]
    %v113 = vld [vmem:[%s1 + $0x148] sm:$0xff]
    %v114 = vld [vmem:[%s1 + $0x150] sm:$0xff]
    %v115 = vld [vmem:[%s1 + $0x158] sm:$0xff]
    %v116 = vld [vmem:[%s1 + $0x160] sm:$0xff]
    %v117 = vld [vmem:[%s1 + $0x168] sm:$0xff]
    %v118 = vld [vmem:[%s1 + $0x170] sm:$0xff]
    %v119 = vld [vmem:[%s1 + $0x178] sm:$0xff]
    %v120 = vld [vmem:[%s1 + $0x180] sm:$0xff]
    %v121 = vld [vmem:[%s1 + $0x188] sm:$0xff]
    %v122 = vld [vmem:[%s1 + $0x190] sm:$0xff]
    %v123 = vld [vmem:[%s1 + $0x198] sm:$0xff]
    %v124 = vld [vmem:[%s1 + $0x1a0] sm:$0xff]
    %v125 = vld [vmem:[%s1 + $0x1a8] sm:$0xff]
    %v126 = vld [vmem:[%s1 + $0x1b0] sm:$0xff]
    %v127 = vld [vmem:[%s1 + $0x1b8] sm:$0xff]
    %v128 = vld [vmem:[%s1 + $0x1c0] sm:$0xff]
    %v129 = vld [vmem:[%s1 + $0x1c8] sm:$0xff]
    %v130 = vld [vmem:[%s1 + $0x1d0] sm:$0xff]
    %v131 = vld [vmem:[%s1 + $0x1d8] sm:$0xff]
    %v132 = vld [vmem:[%s1 + $0x1e0] sm:$0xff]
    %v133 = vld [vmem:[%s1 + $0x1e8] sm:$0xff]
    %v134 = vld [vmem:[%s1 + $0x1f0] sm:$0xff]
    %v135 = vld [vmem:[%s1 + $0x1f8] sm:$0xff]
    %v136 = vld [vmem:[%s1 + $0x200] sm:$0xff]
    %v137 = vld [vmem:[%s1 + $0x208] sm:$0xff]
    %v138 = vld [vmem:[%s1 + $0x210] sm:$0xff]
    %v139 = vld [vmem:[%s1 + $0x218] sm:$0xff]
    %v140 = vld [vmem:[%s1 + $0x220] sm:$0xff]
    %v141 = vld [vmem:[%s1 + $0x228] sm:$0xff]
    %v142 = vld [vmem:[%s1 + $0x230] sm:$0xff]
    %v143 = vld [vmem:[%s1 + $0x238] sm:$0xff]
    %v144 = vld [vmem:[%s1 + $0x240] sm:$0xff]
    %v145 = vld [vmem:[%s1 + $0x248] sm:$0xff]
    %v146 = vld [vmem:[%s1 + $0x250] sm:$0xff]
    %v147 = vld [vmem:[%s1 + $0x258] sm:$0xff]
    %v148 = vld [vmem:[%s1 + $0x260] sm:$0xff]
    %v149 = vld [vmem:[%s1 + $0x268] sm:$0xff]
    %v150 = vld [vmem:[%s1 + $0x270] sm:$0xff]
    %v151 = vld [vmem:[%s1 + $0x278] sm:$0xff]
    %v152 = vld [vmem:[%s1 + $0x280] sm:$0xff]
    %v153 = vld [vmem:[%s1 + $0x288] sm:$0xff]
    %v154 = vld [vmem:[%s1 + $0x290] sm:$0xff]
    %v155 = vld [vmem:[%s1 + $0x298] sm:$0xff]
    %v156 = vld [vmem:[%s1 + $0x2a0] sm:$0xff]
    %v157 = vld [vmem:[%s1 + $0x2a8] sm:$0xff]
    %v158 = vld [vmem:[%s1 + $0x2b0] sm:$0xff]
    %v159 = vld [vmem:[%s1 + $0x2b8] sm:$0xff]
    %v160 = vld [vmem:[%s1 + $0x2c0] sm:$0xff]
    %v161 = vld [vmem:[%s1 + $0x2c8] sm:$0xff]
    %v162 = vld [vmem:[%s1 + $0x2d0] sm:$0xff]
    %v163 = vld [vmem:[%s1 + $0x2d8] sm:$0xff]
    %v164 = vld [vmem:[%s1 + $0x2e0] sm:$0xff]
    %v165 = vld [vmem:[%s1 + $0x2e8] sm:$0xff]
    %v166 = vld [vmem:[%s1 + $0x2f0] sm:$0xff]
    %v167 = vld [vmem:[%s1 + $0x2f8] sm:$0xff]
    %v168 = vld [vmem:[%s1 + $0x300] sm:$0xff]
    %v169 = vld [vmem:[%s1 + $0x308] sm:$0xff]
    %v170 = vld [vmem:[%s1 + $0x310] sm:$0xff]
    %v171 = vld [vmem:[%s1 + $0x318] sm:$0xff]
    %v172 = vld [vmem:[%s1 + $0x320] sm:$0xff]
    %v173 = vld [vmem:[%s1 + $0x328] sm:$0xff]
    %v174 = vld [vmem:[%s1 + $0x330] sm:$0xff]
    %v175 = vld [vmem:[%s1 + $0x338] sm:$0xff]
    %v176 = vld [vmem:[%s1 + $0x340] sm:$0xff]
    %v177 = vld [vmem:[%s1 + $0x348] sm:$0xff]
    %v178 = vld [vmem:[%s1 + $0x350] sm:$0xff]
    %v179 = vld [vmem:[%s1 + $0x358] sm:$0xff]
    %v180 = vld [vmem:[%s1 + $0x360] sm:$0xff]
    %v181 = vld [vmem:[%s1 + $0x368] sm:$0xff]
    %v182 = vld [vmem:[%s1 + $0x370] sm:$0xff]
    %v183 = vld [vmem:[%s1 + $0x378] sm:$0xff]
    %v184 = vld [vmem:[%s1 + $0x380] sm:$0xff]
    %v185 = vld [vmem:[%s1 + $0x388] sm:$0xff]
    %v186 = vld [vmem:[%s1 + $0x390] sm:$0xff]
    %v187 = vld [vmem:[%s1 + $0x398] sm:$0xff]
    %v188 = vld [vmem:[%s1 + $0x3a0] sm:$0xff]
    %v189 = vld [vmem:[%s1 + $0x3a8] sm:$0xff]
    %v190 = vld [vmem:[%s1 + $0x3b0] sm:$0xff]
    %v191 = vld [vmem:[%s1 + $0x3b8] sm:$0xff]
    %v192 = vld [vmem:[%s1 + $0x3c0] sm:$0xff]
    %v193 = vld [vmem:[%s1 + $0x3c8] sm:$0xff]
    %v194 = vld [vmem:[%s1 + $0x3d0] sm:$0xff]
    %v195 = vld [vmem:[%s1 + $0x3d8] sm:$0xff]
    %v196 = vld [vmem:[%s1 + $0x3e0] sm:$0xff]
    %v197 = vld [vmem:[%s1 + $0x3e8] sm:$0xff]
    %v198 = vld [vmem:[%s1 + $0x3f0] sm:$0xff]
    %v199 = vld [vmem:[%s1 + $0x3f8] sm:$0xff]
    %v200 = vpack.c.bf16 %v73, %v72
    %v201 = vpack.c.bf16 %v75, %v74
    %v202 = vpack.c.bf16 %v77, %v76
    %v203 = vpack.c.bf16 %v79, %v78
    %v204 = vpack.c.bf16 %v81, %v80
    %v205 = vpack.c.bf16 %v83, %v82
    %v206 = vpack.c.bf16 %v85, %v84
    %v207 = vpack.c.bf16 %v87, %v86
    %v208 = vpack.c.bf16 %v89, %v88
    %v209 = vpack.c.bf16 %v91, %v90
    %v210 = vpack.c.bf16 %v93, %v92
    %v211 = vpack.c.bf16 %v95, %v94
    %v212 = vpack.c.bf16 %v97, %v96
    %v213 = vpack.c.bf16 %v99, %v98
    %v214 = vpack.c.bf16 %v101, %v100
    %v215 = vpack.c.bf16 %v103, %v102
    %v216 = vpack.c.bf16 %v105, %v104
    %v217 = vpack.c.bf16 %v107, %v106
    %v218 = vpack.c.bf16 %v109, %v108
    %v219 = vpack.c.bf16 %v111, %v110
    %v220 = vpack.c.bf16 %v113, %v112
    %v221 = vpack.c.bf16 %v115, %v114
    %v222 = vpack.c.bf16 %v117, %v116
    %v223 = vpack.c.bf16 %v119, %v118
    %v224 = vpack.c.bf16 %v121, %v120
    %v225 = vpack.c.bf16 %v123, %v122
    %v226 = vpack.c.bf16 %v125, %v124
    %v227 = vpack.c.bf16 %v127, %v126
    %v228 = vpack.c.bf16 %v129, %v128
    %v229 = vpack.c.bf16 %v131, %v130
    %v230 = vpack.c.bf16 %v133, %v132
    %v231 = vpack.c.bf16 %v135, %v134
    %v232 = vpack.c.bf16 %v137, %v136
    %v233 = vpack.c.bf16 %v139, %v138
    %v234 = vpack.c.bf16 %v141, %v140
    %v235 = vpack.c.bf16 %v143, %v142
    %v236 = vpack.c.bf16 %v145, %v144
    %v237 = vpack.c.bf16 %v147, %v146
    %v238 = vpack.c.bf16 %v149, %v148
    %v239 = vpack.c.bf16 %v151, %v150
    %v240 = vpack.c.bf16 %v153, %v152
    %v241 = vpack.c.bf16 %v155, %v154
    %v242 = vpack.c.bf16 %v157, %v156
    %v243 = vpack.c.bf16 %v159, %v158
    %v244 = vpack.c.bf16 %v161, %v160
    %v245 = vpack.c.bf16 %v163, %v162
    %v246 = vpack.c.bf16 %v165, %v164
    %v247 = vpack.c.bf16 %v167, %v166
    %v248 = vpack.c.bf16 %v169, %v168
    %v249 = vpack.c.bf16 %v171, %v170
    %v250 = vpack.c.bf16 %v173, %v172
    %v251 = vpack.c.bf16 %v175, %v174
    %v252 = vpack.c.bf16 %v177, %v176
    %v253 = vpack.c.bf16 %v179, %v178
    %v254 = vpack.c.bf16 %v181, %v180
    %v255 = vpack.c.bf16 %v183, %v182
    %v256 = vpack.c.bf16 %v185, %v184
    %v257 = vpack.c.bf16 %v187, %v186
    %v258 = vpack.c.bf16 %v189, %v188
    %v259 = vpack.c.bf16 %v191, %v190
    %v260 = vpack.c.bf16 %v193, %v192
    %v261 = vpack.c.bf16 %v195, %v194
    %v262 = vpack.c.bf16 %v197, %v196
    %v263 = vpack.c.bf16 %v199, %v198
    %v264 = vld [vmem:[%s2] sm:$0x1]
    %v266 = vlaneseq
    %v267 = vshrl.u32 %v266, 7
    %v268 = vsub.s32 0, %v267
    %v269 = vrot.slane %v264, %v268
    %271 = vmatprep.subr.bf16.mxu0 0
    %272 = vmatpush1.bf16.msra.mxu0 %v207
    %273 = vmatprep.subr.bf16.mxu0 0
    %274 = vmatpush1.bf16.msra.mxu0 %v206
    %275 = vmatprep.subr.bf16.mxu0 0
    %276 = vmatpush1.bf16.msra.mxu0 %v205
    %277 = vmatprep.subr.bf16.mxu0 0
    %278 = vmatpush1.bf16.msra.mxu0 %v204
    %279 = vmatprep.subr.bf16.mxu0 0
    %280 = vmatpush1.bf16.msra.mxu0 %v203
    %281 = vmatprep.subr.bf16.mxu0 0
    %282 = vmatpush1.bf16.msra.mxu0 %v202
    %283 = vmatprep.subr.bf16.mxu0 0
    %284 = vmatpush1.bf16.msra.mxu0 %v201
    %285 = vmatprep.subr.bf16.mxu0 0
    %286 = vmatpush1.bf16.msra.mxu0 %v200
    %287 = vmatprep.subr.bf16.mxu0 0
    %288 = vmatpush2.bf16.msra.mxu0 %v215
    %289 = vmatprep.subr.bf16.mxu0 0
    %290 = vmatpush2.bf16.msra.mxu0 %v214
    %291 = vmatprep.subr.bf16.mxu0 0
    %292 = vmatpush2.bf16.msra.mxu0 %v213
    %293 = vmatprep.subr.bf16.mxu0 0
    %294 = vmatpush2.bf16.msra.mxu0 %v212
    %295 = vmatprep.subr.bf16.mxu0 0
    %296 = vmatpush2.bf16.msra.mxu0 %v211
    %297 = vmatprep.subr.bf16.mxu0 0
    %298 = vmatpush2.bf16.msra.mxu0 %v210
    %299 = vmatprep.subr.bf16.mxu0 0
    %300 = vmatpush2.bf16.msra.mxu0 %v209
    %301 = vmatprep.subr.bf16.mxu0 0
    %302 = vmatpush2.bf16.msra.mxu0 %v208
    %303 = vmatprep.mubr.bf16.mxu0 %v65
    %304 = vmatmul.mubr.bf16.gmra.mxu0 %v64
    %v305 = vpop.f32.mrf.mxu0
    %v306 = vadd.f32 %v269, %v305
    %v307 = vpop.f32.mrf.mxu0
    %v308 = vpop.f32.mrf.mxu0
    %v309 = vpop.f32.mrf.mxu0
    %310 = vdwg.mxu0
    %311 = vmatprep.subr.bf16.mxu0 0
    %312 = vmatpush1.bf16.msra.mxu0 %v223
    %313 = vmatprep.subr.bf16.mxu0 0
    %314 = vmatpush1.bf16.msra.mxu0 %v222
    %315 = vmatprep.subr.bf16.mxu0 0
    %316 = vmatpush1.bf16.msra.mxu0 %v221
    %317 = vmatprep.subr.bf16.mxu0 0
    %318 = vmatpush1.bf16.msra.mxu0 %v220
    %319 = vmatprep.subr.bf16.mxu0 0
    %320 = vmatpush1.bf16.msra.mxu0 %v219
    %321 = vmatprep.subr.bf16.mxu0 0
    %322 = vmatpush1.bf16.msra.mxu0 %v218
    %323 = vmatprep.subr.bf16.mxu0 0
    %324 = vmatpush1.bf16.msra.mxu0 %v217
    %325 = vmatprep.subr.bf16.mxu0 0
    %326 = vmatpush1.bf16.msra.mxu0 %v216
    %327 = vmatprep.subr.bf16.mxu0 0
    %328 = vmatpush2.bf16.msra.mxu0 %v231
    %329 = vmatprep.subr.bf16.mxu0 0
    %330 = vmatpush2.bf16.msra.mxu0 %v230
    %331 = vmatprep.subr.bf16.mxu0 0
    %332 = vmatpush2.bf16.msra.mxu0 %v229
    %333 = vmatprep.subr.bf16.mxu0 0
    %334 = vmatpush2.bf16.msra.mxu0 %v228
    %335 = vmatprep.subr.bf16.mxu0 0
    %336 = vmatpush2.bf16.msra.mxu0 %v227
    %337 = vmatprep.subr.bf16.mxu0 0
    %338 = vmatpush2.bf16.msra.mxu0 %v226
    %339 = vmatprep.subr.bf16.mxu0 0
    %340 = vmatpush2.bf16.msra.mxu0 %v225
    %341 = vmatprep.subr.bf16.mxu0 0
    %342 = vmatpush2.bf16.msra.mxu0 %v224
    %343 = vmatprep.mubr.bf16.mxu0 %v67
    %344 = vmatmul.mubr.bf16.gmra.mxu0 %v66
    %v345 = vpop.f32.mrf.mxu0
    %v346 = vadd.f32 %v306, %v345
    %v347 = vpop.f32.mrf.mxu0
    %v348 = vpop.f32.mrf.mxu0
    %v349 = vpop.f32.mrf.mxu0
    %350 = vdwg.mxu0
    %351 = vmatprep.subr.bf16.mxu0 0
    %352 = vmatpush1.bf16.msra.mxu0 %v239
    %353 = vmatprep.subr.bf16.mxu0 0
    %354 = vmatpush1.bf16.msra.mxu0 %v238
    %355 = vmatprep.subr.bf16.mxu0 0
    %356 = vmatpush1.bf16.msra.mxu0 %v237
    %357 = vmatprep.subr.bf16.mxu0 0
    %358 = vmatpush1.bf16.msra.mxu0 %v236
    %359 = vmatprep.subr.bf16.mxu0 0
    %360 = vmatpush1.bf16.msra.mxu0 %v235
    %361 = vmatprep.subr.bf16.mxu0 0
    %362 = vmatpush1.bf16.msra.mxu0 %v234
    %363 = vmatprep.subr.bf16.mxu0 0
    %364 = vmatpush1.bf16.msra.mxu0 %v233
    %365 = vmatprep.subr.bf16.mxu0 0
    %366 = vmatpush1.bf16.msra.mxu0 %v232
    %367 = vmatprep.subr.bf16.mxu0 0
    %368 = vmatpush2.bf16.msra.mxu0 %v247
    %369 = vmatprep.subr.bf16.mxu0 0
    %370 = vmatpush2.bf16.msra.mxu0 %v246
    %371 = vmatprep.subr.bf16.mxu0 0
    %372 = vmatpush2.bf16.msra.mxu0 %v245
    %373 = vmatprep.subr.bf16.mxu0 0
    %374 = vmatpush2.bf16.msra.mxu0 %v244
    %375 = vmatprep.subr.bf16.mxu0 0
    %376 = vmatpush2.bf16.msra.mxu0 %v243
    %377 = vmatprep.subr.bf16.mxu0 0
    %378 = vmatpush2.bf16.msra.mxu0 %v242
    %379 = vmatprep.subr.bf16.mxu0 0
    %380 = vmatpush2.bf16.msra.mxu0 %v241
    %381 = vmatprep.subr.bf16.mxu0 0
    %382 = vmatpush2.bf16.msra.mxu0 %v240
    %383 = vmatprep.mubr.bf16.mxu0 %v69
    %384 = vmatmul.mubr.bf16.gmra.mxu0 %v68
    %v385 = vpop.f32.mrf.mxu0
    %v386 = vadd.f32 %v346, %v385
    %v387 = vpop.f32.mrf.mxu0
    %v388 = vpop.f32.mrf.mxu0
    %v389 = vpop.f32.mrf.mxu0
    %390 = vdwg.mxu0
    %391 = vmatprep.subr.bf16.mxu0 0
    %392 = vmatpush1.bf16.msra.mxu0 %v255
    %393 = vmatprep.subr.bf16.mxu0 0
    %394 = vmatpush1.bf16.msra.mxu0 %v254
    %395 = vmatprep.subr.bf16.mxu0 0
    %396 = vmatpush1.bf16.msra.mxu0 %v253
    %397 = vmatprep.subr.bf16.mxu0 0
    %398 = vmatpush1.bf16.msra.mxu0 %v252
    %399 = vmatprep.subr.bf16.mxu0 0
    %400 = vmatpush1.bf16.msra.mxu0 %v251
    %401 = vmatprep.subr.bf16.mxu0 0
    %402 = vmatpush1.bf16.msra.mxu0 %v250
    %403 = vmatprep.subr.bf16.mxu0 0
    %404 = vmatpush1.bf16.msra.mxu0 %v249
    %405 = vmatprep.subr.bf16.mxu0 0
    %406 = vmatpush1.bf16.msra.mxu0 %v248
    %407 = vmatprep.subr.bf16.mxu0 0
    %408 = vmatpush2.bf16.msra.mxu0 %v263
    %409 = vmatprep.subr.bf16.mxu0 0
    %410 = vmatpush2.bf16.msra.mxu0 %v262
    %411 = vmatprep.subr.bf16.mxu0 0
    %412 = vmatpush2.bf16.msra.mxu0 %v261
    %413 = vmatprep.subr.bf16.mxu0 0
    %414 = vmatpush2.bf16.msra.mxu0 %v260
    %415 = vmatprep.subr.bf16.mxu0 0
    %416 = vmatpush2.bf16.msra.mxu0 %v259
    %417 = vmatprep.subr.bf16.mxu0 0
    %418 = vmatpush2.bf16.msra.mxu0 %v258
    %419 = vmatprep.subr.bf16.mxu0 0
    %420 = vmatpush2.bf16.msra.mxu0 %v257
    %421 = vmatprep.subr.bf16.mxu0 0
    %422 = vmatpush2.bf16.msra.mxu0 %v256
    %423 = vmatprep.mubr.bf16.mxu0 %v71
    %424 = vmatmul.mubr.bf16.gmra.mxu0 %v70
    %v425 = vpop.f32.mrf.mxu0
    %v426 = vadd.f32 %v386, %v425
    %v427 = vpop.f32.mrf.mxu0
    %v428 = vpop.f32.mrf.mxu0
    %v429 = vpop.f32.mrf.mxu0
    %430 = vdwg.mxu0
    %vm431 = vcmask 254976
    %v432 = vsel %vm431, %v426, -inf
    %433 = vmax.xlane.f32.xlu0 %v432
    %v434 = vpop.xlane.xlu0 %433
    %v435 = vand.u32 2147483647, %v434
    %v436 = vsub.f32 0.0, %v435
    %v437 = vmul.f32 %v436, 1.442695
    %v438 = vpow.pop %v437
    %vm439 = vcmp.ge.f32.partialorder %v434, 0.0
    %v440 = vadd.f32 %v438, 1.0
    %v441 = vrcp.pop %v440
    %v442 = vmul.f32 %v438, %v441
    %v443 = vmul.f32 1.0, %v441
    %v444 = vsel %vm439, %v442, %v443
    %445 = vst.msk [vmem:[#allocation2] sm:$0x3] %vm431, %v426
    %vm446 = vcmask 1024
    %447 = vst.msk [vmem:[%s4] sm:$0x3] %vm446, %v444
    // Predicated region
    $region14: #{tpu_custom_call.1} parent=1 // pred_check
      _
    $region15: #{tpu_custom_call.1} parent=1 // pred_check_branch
      %449 = sbr.rel (0) target = $region17
    $region16: #{tpu_custom_call.1} parent=1 // pred_region
      %s451 = ssub.s32 32, 32
      %452 = vsyncadd [#allocation3], %s451
      %s454 = sshll.u32 [#allocation2], 4
      %s455 = int_to_ptr.vmem [resolvable:$true] %s454
      %457 = dma.vmem_to_hbm [thread:$0]  %s455, 32, %s3, [#allocation3]
    $region17: #{tpu_custom_call.1} parent=1 // pred_fallthru
      _
    // Predicated region
    $region18: #{tpu_custom_call.1} parent=1 // pred_check
      _
    $region19: #{tpu_custom_call.1} parent=1 // pred_check_branch
      %459 = sbr.rel (0) target = $region21
    $region20: #{tpu_custom_call.1} parent=1 // pred_region
      _
    $region21: #{tpu_custom_call.1} parent=1 // pred_fallthru
      _
    // Predicated region
    $region22: #{tpu_custom_call.1} parent=1 // pred_check
      _
    $region23: #{tpu_custom_call.1} parent=1 // pred_check_branch
      %461 = sbr.rel (0) target = $region25
    $region24: #{tpu_custom_call.1} parent=1 // pred_region
      %462 = dma.done [#allocation3], 32
    $region25: #{tpu_custom_call.1} parent=1 // pred_fallthru
      _
    // Predicated region
    $region26: #{tpu_custom_call.1} parent=1 // pred_check
      _
    $region27: #{tpu_custom_call.1} parent=1 // pred_check_branch
      %464 = sbr.rel (0) target = $region29
    $region28: #{tpu_custom_call.1} parent=1 // pred_region
      _
    $region29: #{tpu_custom_call.1} parent=1 // pred_fallthru
      _
    %465 = vsyncpa [#allocation3], 1

</llo_original>
